<compile_context>
chip_gen: v7x
topology: tpu7x:2x2x1
jax: 0.10.0
libtpu: 0.0.40
codegen_flags: <defaults>
</compile_context>

<pallas_src>
import jax
import jax.numpy as jnp
from jax.experimental import pallas as pl
from jax.experimental.pallas import tpu as pltpu

# ----------------------------- problem sizes -----------------------------
N_A = 4            # n_a  (input is (B, n_a))
HIDDEN = 32        # hidden_size
L = 3              # number of blocks (L-1 hidden repeat layers)
P = 5              # output dim p
BATCH = 8
EPS = 1e-5         # nn.BatchNorm1d default eps

LANE = 128                       # lane width of every packed block
NSEG = L + 1                     # fc0 + (L-1) repeat layers + fc_out
NVEC = 3 * L + 1                 # (bias, gamma, beta) per BN block + fc_out bias
TOP_IN = 2 * N_A                 # rows of each "top" (out1) weight block
TOP_BLK = -(-TOP_IN // 8) * 8    # sublane-aligned top block height (= 8 here)
BOT_ROW0 = NSEG * TOP_BLK                     # 32: start of h-weight blocks
VEC_ROW0 = BOT_ROW0 + L * HIDDEN              # 128: start of bias/affine rows
VEC_BLK = -(-NVEC // 8) * 8                   # 16
SLAB_ROWS = VEC_ROW0 + VEC_BLK                # 144 rows x 128 lanes (bf16)


# ------------------------------ kernel ------------------------------------
def _net_kernel(a_ref, slab_ref, out_ref):
    a = a_ref[...].astype(jnp.float32)
    out0 = jnp.exp(-1.0 * a)           # (B, n_a)
    om = 1.0 - out0                    # (B, n_a)

    # bias / gamma / beta rows, loaded once, f32, broadcast over sublanes.
    vecs = slab_ref[VEC_ROW0:VEC_ROW0 + VEC_BLK, :].astype(jnp.float32)

    def vec(i):                        # (1, 128)
        return vecs[i:i + 1, :]

    def top(seg):
        """out1 @ W[:2*n_a] for segment `seg`, as two small MXU dots."""
        r0 = seg * TOP_BLK
        w = slab_ref[r0:r0 + TOP_IN, :].astype(jnp.float32)   # (2*n_a, 128)
        return (jnp.dot(out0, w[:N_A], preferred_element_type=jnp.float32)
                + jnp.dot(om, w[N_A:], preferred_element_type=jnp.float32))

    def bot(j, h):
        """h @ W[2*n_a:] for bottom block j (no zero-padded rows)."""
        r0 = BOT_ROW0 + j * HIDDEN
        w = slab_ref[r0:r0 + HIDDEN, :].astype(jnp.float32)   # (HIDDEN, 128)
        return jnp.dot(h[:, :HIDDEN], w, preferred_element_type=jnp.float32)

    def bn(x, gamma, beta):
        """BatchNorm1d, training mode: batch stats, biased variance, eps=1e-5."""
        mu = jnp.mean(x, axis=0, keepdims=True)
        xc = x - mu
        var = jnp.mean(xc * xc, axis=0, keepdims=True)
        return gamma * (xc * jax.lax.rsqrt(var + EPS)) + beta

    # fc0 -> ReLU -> BatchNorm1d
    h = bn(jnp.maximum(top(0) + vec(0), 0.0), vec(1), vec(2))

    # repeated Linear -> ReLU -> BN blocks (lane concat replaced by split dots)
    for j in range(L - 1):
        pre = top(j + 1) + bot(j, h) + vec(3 + 3 * j)
        h = bn(jnp.maximum(pre, 0.0), vec(4 + 3 * j), vec(5 + 3 * j))

    # fc_out (lane-dense (B, 128) store; valid columns = P)
    y = top(L) + bot(L - 1, h) + vec(3 + 3 * (L - 1))
    out_ref[...] = y.astype(out_ref.dtype)


# ------------------------------- wrapper ----------------------------------
def net_forward(a, slab):
    """Whole Net forward in one gridless Pallas call (everything in VMEM)."""
    B = a.shape[0]
    vmem = pl.BlockSpec(memory_space=pltpu.MemorySpace.VMEM)

    flops = 2 * B * (TOP_IN * NSEG * LANE + L * HIDDEN * LANE)
    transcendentals = B * N_A + L * LANE
    bytes_accessed = 4 * a.size + 2 * slab.size + 4 * B * LANE

    y_pad = pl.pallas_call(
        _net_kernel,
        out_shape=jax.ShapeDtypeStruct((B, LANE), jnp.float32),
        in_specs=[vmem, vmem],
        out_specs=vmem,
        cost_estimate=pl.CostEstimate(
            flops=flops,
            transcendentals=transcendentals,
            bytes_accessed=bytes_accessed),
    )(a, slab)
    return y_pad[:, :P]


# --------------------------- parameter creation ---------------------------
def init_params(key):
    """Deterministic synthetic parameters matching the nn.Module shapes
    (weights stored pre-transposed as (in_features, out_features))."""
    d_in0 = 2 * N_A
    d_mid = HIDDEN + 2 * N_A
    ks = jax.random.split(key, 6)

    def u(k, shape, fan_in):
        bound = 1.0 / jnp.sqrt(float(fan_in))
        return jax.random.uniform(k, shape, jnp.float32, -bound, bound)

    w0t = u(ks[0], (d_in0, HIDDEN), d_in0)
    b0 = u(ks[1], (1, HIDDEN), d_in0)
    g1 = jnp.ones((1, HIDDEN), jnp.float32)
    be1 = jnp.zeros((1, HIDDEN), jnp.float32)
    wlt = u(ks[2], (L - 1, d_mid, HIDDEN), d_mid)
    bl = u(ks[3], (L - 1, 1, HIDDEN), d_mid)
    gl = jnp.ones((L - 1, 1, HIDDEN), jnp.float32)
    bel = jnp.zeros((L - 1, 1, HIDDEN), jnp.float32)
    woutt = u(ks[4], (d_mid, P), d_mid)
    bout = u(ks[5], (1, P), d_mid)
    return (w0t, b0, g1, be1, wlt, bl, gl, bel, woutt, bout)


def quantize_params(params):
    """bf16-stored model parameters (what the kernel actually consumes)."""
    return jax.tree_util.tree_map(
        lambda x: x.astype(jnp.bfloat16).astype(jnp.float32), params)


def pack_params(params):
    """One-time host-side packing into a single lane-dense bf16 slab.

    Layout (rows x 128 lanes):
      [seg*8   : seg*8+8  )  out1-weights of segment seg (fc0, layers, fc_out)
      [32+32*j : 64+32*j  )  h-weights of bottom block j (layers, fc_out)
      [128+i   : 129+i    )  bias/gamma/beta row i
    All kernel slices start at sublane-aligned offsets and are 128 lanes wide.
    """
    (w0t, b0, g1, be1, wlt, bl, gl, bel, woutt, bout) = params
    n_rep = L - 1
    slab = jnp.zeros((SLAB_ROWS, LANE), jnp.float32)

    def put(sl, r0, mat):
        return sl.at[r0:r0 + mat.shape[0], 0:mat.shape[1]].set(mat)

    # top (out1) blocks
    slab = put(slab, 0 * TOP_BLK, w0t)                       # fc0: (8, HIDDEN)
    for j in range(n_rep):
        slab = put(slab, (j + 1) * TOP_BLK, wlt[j][:TOP_IN])
    slab = put(slab, L * TOP_BLK, woutt[:TOP_IN])            # fc_out: (8, P)

    # bottom (h) blocks -- no zero-padded rows are ever DMA'd
    for j in range(n_rep):
        slab = put(slab, BOT_ROW0 + j * HIDDEN, wlt[j][TOP_IN:])
    slab = put(slab, BOT_ROW0 + n_rep * HIDDEN, woutt[TOP_IN:])

    # bias / gamma / beta rows
    vec_rows = [b0, g1, be1]
    for j in range(n_rep):
        vec_rows += [bl[j], gl[j], bel[j]]
    vec_rows.append(bout)
    for i, v in enumerate(vec_rows):
        slab = put(slab, VEC_ROW0 + i, v.reshape(1, -1))

    return slab.astype(jnp.bfloat16)


# ------------------------------ JAX reference ------------------------------
def _bn_ref(x, gamma, beta):
    mu = jnp.mean(x, axis=0, keepdims=True)
    var = jnp.mean((x - mu) * (x - mu), axis=0, keepdims=True)
    return gamma * (x - mu) * jax.lax.rsqrt(var + EPS) + beta


def net_reference(a, params):
    """PyTorch-faithful (concat-based) reference."""
    (w0t, b0, g1, be1, wlt, bl, gl, bel, woutt, bout) = params
    out0 = jnp.exp(-a)
    out1 = jnp.concatenate([out0, 1.0 - out0], axis=1)
    h = _bn_ref(jnp.maximum(out1 @ w0t + b0, 0.0), g1, be1)
    out = jnp.concatenate([out1, h], axis=1)
    for j in range(L - 1):
        h = _bn_ref(jnp.maximum(out @ wlt[j] + bl[j], 0.0), gl[j], bel[j])
        out = jnp.concatenate([out1, h], axis=1)
    return out @ woutt + bout


if __name__ == "__main__":
    key = jax.random.PRNGKey(0)
    k_in, k_par = jax.random.split(key)
    a = jax.random.uniform(k_in, (BATCH, N_A), jnp.float32, 0.0, 2.0)

    params = init_params(k_par)
    params_q = quantize_params(params)   # the bf16-stored model parameters
    slab = pack_params(params)           # same bf16 values, packed for the kernel

    y = jax.block_until_ready(net_forward(a, slab))
    y_ref = net_reference(a, params_q)   # module forward with identical params

    assert y.shape == (BATCH, P)
    max_err = float(jnp.max(jnp.abs(y - y_ref)))
    assert jnp.allclose(y, y_ref, atol=5e-4, rtol=5e-4), (
        f"mismatch: max abs err {max_err}")

    print("KERNEL_OK")
</pallas_src>

<mosaic_0001>
module attributes {stable_mosaic.version = 11 : i64} {
  func.func @_net_kernel(%arg0: memref<8x4xf32, #tpu.memory_space<vmem>>, %arg1: memref<144x128xbf16, #tpu.memory_space<vmem>>, %arg2: memref<8x128xf32, #tpu.memory_space<vmem>>) attributes {dimension_semantics = [], scalar_prefetch = 0 : i64, scratch_operands = 0 : i64, tpu.core_type = #tpu.core_type<tc>} {
    %c0 = arith.constant 0 : index
    %c0_0 = arith.constant 0 : index
    %0 = vector.load %arg0[%c0, %c0_0] : memref<8x4xf32, #tpu.memory_space<vmem>>, vector<8x4xf32>
    %cst = arith.constant -1.000000e+00 : f32
    %1 = vector.broadcast %cst : f32 to vector<8x4xf32>
    %2 = arith.mulf %1, %0 : vector<8x4xf32>
    %3 = math.exp %2 : vector<8x4xf32>
    %cst_1 = arith.constant 1.000000e+00 : f32
    %4 = vector.broadcast %cst_1 : f32 to vector<8x4xf32>
    %5 = arith.subf %4, %3 : vector<8x4xf32>
    %c128 = arith.constant 128 : index
    %c0_2 = arith.constant 0 : index
    %6 = vector.load %arg1[%c128, %c0_2] : memref<144x128xbf16, #tpu.memory_space<vmem>>, vector<16x128xbf16>
    %7 = arith.extf %6 : vector<16x128xbf16> to vector<16x128xf32>
    %c0_3 = arith.constant 0 : index
    %c0_4 = arith.constant 0 : index
    %8 = vector.load %arg1[%c0_3, %c0_4] : memref<144x128xbf16, #tpu.memory_space<vmem>>, vector<8x128xbf16>
    %9 = arith.extf %8 : vector<8x128xbf16> to vector<8x128xf32>
    %10 = vector.extract_strided_slice %9 {offsets = [0, 0], sizes = [4, 128], strides = [1, 1]} : vector<8x128xf32> to vector<4x128xf32>
    %cst_5 = arith.constant dense<0.000000e+00> : vector<8x128xf32>
    %11 = tpu.matmul %3, %10, %cst_5 {dimension_numbers = #tpu.dot_dimension_numbers<[1], [0], [0], [1], [0, 0, 1, 1], [], []>} : vector<8x4xf32>, vector<4x128xf32>, vector<8x128xf32> -> vector<8x128xf32>
    %12 = vector.extract_strided_slice %9 {offsets = [4, 0], sizes = [4, 128], strides = [1, 1]} : vector<8x128xf32> to vector<4x128xf32>
    %cst_6 = arith.constant dense<0.000000e+00> : vector<8x128xf32>
    %13 = tpu.matmul %5, %12, %cst_6 {dimension_numbers = #tpu.dot_dimension_numbers<[1], [0], [0], [1], [0, 0, 1, 1], [], []>} : vector<8x4xf32>, vector<4x128xf32>, vector<8x128xf32> -> vector<8x128xf32>
    %14 = arith.addf %11, %13 : vector<8x128xf32>
    %15 = vector.extract_strided_slice %7 {offsets = [0, 0], sizes = [1, 128], strides = [1, 1]} : vector<16x128xf32> to vector<1x128xf32>
    %16 = vector.broadcast %15 : vector<1x128xf32> to vector<8x128xf32>
    %17 = arith.addf %14, %16 : vector<8x128xf32>
    %cst_7 = arith.constant 0.000000e+00 : f32
    %18 = vector.broadcast %cst_7 : f32 to vector<8x128xf32>
    %19 = arith.maximumf %17, %18 : vector<8x128xf32>
    %20 = vector.extract_strided_slice %7 {offsets = [1, 0], sizes = [1, 128], strides = [1, 1]} : vector<16x128xf32> to vector<1x128xf32>
    %21 = vector.extract_strided_slice %7 {offsets = [2, 0], sizes = [1, 128], strides = [1, 1]} : vector<16x128xf32> to vector<1x128xf32>
    %cst_8 = arith.constant dense<0.000000e+00> : vector<128xf32>
    %22 = vector.multi_reduction <add>, %19, %cst_8 [0] : vector<8x128xf32> to vector<128xf32>
    %23 = vector.shape_cast %22 : vector<128xf32> to vector<1x128xf32>
    %cst_9 = arith.constant 8.000000e+00 : f32
    %24 = vector.broadcast %cst_9 : f32 to vector<1x128xf32>
    %25 = arith.divf %23, %24 : vector<1x128xf32>
    %26 = vector.broadcast %25 : vector<1x128xf32> to vector<8x128xf32>
    %27 = arith.subf %19, %26 : vector<8x128xf32>
    %28 = arith.mulf %27, %27 : vector<8x128xf32>
    %cst_10 = arith.constant dense<0.000000e+00> : vector<128xf32>
    %29 = vector.multi_reduction <add>, %28, %cst_10 [0] : vector<8x128xf32> to vector<128xf32>
    %30 = vector.shape_cast %29 : vector<128xf32> to vector<1x128xf32>
    %cst_11 = arith.constant 8.000000e+00 : f32
    %31 = vector.broadcast %cst_11 : f32 to vector<1x128xf32>
    %32 = arith.divf %30, %31 : vector<1x128xf32>
    %cst_12 = arith.constant 9.99999974E-6 : f32
    %33 = vector.broadcast %cst_12 : f32 to vector<1x128xf32>
    %34 = arith.addf %32, %33 : vector<1x128xf32>
    %35 = math.rsqrt %34 : vector<1x128xf32>
    %36 = vector.broadcast %35 : vector<1x128xf32> to vector<8x128xf32>
    %37 = arith.mulf %27, %36 : vector<8x128xf32>
    %38 = vector.broadcast %20 : vector<1x128xf32> to vector<8x128xf32>
    %39 = arith.mulf %38, %37 : vector<8x128xf32>
    %40 = vector.broadcast %21 : vector<1x128xf32> to vector<8x128xf32>
    %41 = arith.addf %39, %40 : vector<8x128xf32>
    %c8 = arith.constant 8 : index
    %c0_13 = arith.constant 0 : index
    %42 = vector.load %arg1[%c8, %c0_13] : memref<144x128xbf16, #tpu.memory_space<vmem>>, vector<8x128xbf16>
    %43 = arith.extf %42 : vector<8x128xbf16> to vector<8x128xf32>
    %44 = vector.extract_strided_slice %43 {offsets = [0, 0], sizes = [4, 128], strides = [1, 1]} : vector<8x128xf32> to vector<4x128xf32>
    %cst_14 = arith.constant dense<0.000000e+00> : vector<8x128xf32>
    %45 = tpu.matmul %3, %44, %cst_14 {dimension_numbers = #tpu.dot_dimension_numbers<[1], [0], [0], [1], [0, 0, 1, 1], [], []>} : vector<8x4xf32>, vector<4x128xf32>, vector<8x128xf32> -> vector<8x128xf32>
    %46 = vector.extract_strided_slice %43 {offsets = [4, 0], sizes = [4, 128], strides = [1, 1]} : vector<8x128xf32> to vector<4x128xf32>
    %cst_15 = arith.constant dense<0.000000e+00> : vector<8x128xf32>
    %47 = tpu.matmul %5, %46, %cst_15 {dimension_numbers = #tpu.dot_dimension_numbers<[1], [0], [0], [1], [0, 0, 1, 1], [], []>} : vector<8x4xf32>, vector<4x128xf32>, vector<8x128xf32> -> vector<8x128xf32>
    %48 = arith.addf %45, %47 : vector<8x128xf32>
    %c32 = arith.constant 32 : index
    %c0_16 = arith.constant 0 : index
    %49 = vector.load %arg1[%c32, %c0_16] : memref<144x128xbf16, #tpu.memory_space<vmem>>, vector<32x128xbf16>
    %50 = arith.extf %49 : vector<32x128xbf16> to vector<32x128xf32>
    %51 = vector.extract_strided_slice %41 {offsets = [0, 0], sizes = [8, 32], strides = [1, 1]} : vector<8x128xf32> to vector<8x32xf32>
    %cst_17 = arith.constant dense<0.000000e+00> : vector<8x128xf32>
    %52 = tpu.matmul %51, %50, %cst_17 {dimension_numbers = #tpu.dot_dimension_numbers<[1], [0], [0], [1], [0, 0, 1, 1], [], []>} : vector<8x32xf32>, vector<32x128xf32>, vector<8x128xf32> -> vector<8x128xf32>
    %53 = arith.addf %48, %52 : vector<8x128xf32>
    %54 = vector.extract_strided_slice %7 {offsets = [3, 0], sizes = [1, 128], strides = [1, 1]} : vector<16x128xf32> to vector<1x128xf32>
    %55 = vector.broadcast %54 : vector<1x128xf32> to vector<8x128xf32>
    %56 = arith.addf %53, %55 : vector<8x128xf32>
    %cst_18 = arith.constant 0.000000e+00 : f32
    %57 = vector.broadcast %cst_18 : f32 to vector<8x128xf32>
    %58 = arith.maximumf %56, %57 : vector<8x128xf32>
    %59 = vector.extract_strided_slice %7 {offsets = [4, 0], sizes = [1, 128], strides = [1, 1]} : vector<16x128xf32> to vector<1x128xf32>
    %60 = vector.extract_strided_slice %7 {offsets = [5, 0], sizes = [1, 128], strides = [1, 1]} : vector<16x128xf32> to vector<1x128xf32>
    %cst_19 = arith.constant dense<0.000000e+00> : vector<128xf32>
    %61 = vector.multi_reduction <add>, %58, %cst_19 [0] : vector<8x128xf32> to vector<128xf32>
    %62 = vector.shape_cast %61 : vector<128xf32> to vector<1x128xf32>
    %cst_20 = arith.constant 8.000000e+00 : f32
    %63 = vector.broadcast %cst_20 : f32 to vector<1x128xf32>
    %64 = arith.divf %62, %63 : vector<1x128xf32>
    %65 = vector.broadcast %64 : vector<1x128xf32> to vector<8x128xf32>
    %66 = arith.subf %58, %65 : vector<8x128xf32>
    %67 = arith.mulf %66, %66 : vector<8x128xf32>
    %cst_21 = arith.constant dense<0.000000e+00> : vector<128xf32>
    %68 = vector.multi_reduction <add>, %67, %cst_21 [0] : vector<8x128xf32> to vector<128xf32>
    %69 = vector.shape_cast %68 : vector<128xf32> to vector<1x128xf32>
    %cst_22 = arith.constant 8.000000e+00 : f32
    %70 = vector.broadcast %cst_22 : f32 to vector<1x128xf32>
    %71 = arith.divf %69, %70 : vector<1x128xf32>
    %cst_23 = arith.constant 9.99999974E-6 : f32
    %72 = vector.broadcast %cst_23 : f32 to vector<1x128xf32>
    %73 = arith.addf %71, %72 : vector<1x128xf32>
    %74 = math.rsqrt %73 : vector<1x128xf32>
    %75 = vector.broadcast %74 : vector<1x128xf32> to vector<8x128xf32>
    %76 = arith.mulf %66, %75 : vector<8x128xf32>
    %77 = vector.broadcast %59 : vector<1x128xf32> to vector<8x128xf32>
    %78 = arith.mulf %77, %76 : vector<8x128xf32>
    %79 = vector.broadcast %60 : vector<1x128xf32> to vector<8x128xf32>
    %80 = arith.addf %78, %79 : vector<8x128xf32>
    %c16 = arith.constant 16 : index
    %c0_24 = arith.constant 0 : index
    %81 = vector.load %arg1[%c16, %c0_24] : memref<144x128xbf16, #tpu.memory_space<vmem>>, vector<8x128xbf16>
    %82 = arith.extf %81 : vector<8x128xbf16> to vector<8x128xf32>
    %83 = vector.extract_strided_slice %82 {offsets = [0, 0], sizes = [4, 128], strides = [1, 1]} : vector<8x128xf32> to vector<4x128xf32>
    %cst_25 = arith.constant dense<0.000000e+00> : vector<8x128xf32>
    %84 = tpu.matmul %3, %83, %cst_25 {dimension_numbers = #tpu.dot_dimension_numbers<[1], [0], [0], [1], [0, 0, 1, 1], [], []>} : vector<8x4xf32>, vector<4x128xf32>, vector<8x128xf32> -> vector<8x128xf32>
    %85 = vector.extract_strided_slice %82 {offsets = [4, 0], sizes = [4, 128], strides = [1, 1]} : vector<8x128xf32> to vector<4x128xf32>
    %cst_26 = arith.constant dense<0.000000e+00> : vector<8x128xf32>
    %86 = tpu.matmul %5, %85, %cst_26 {dimension_numbers = #tpu.dot_dimension_numbers<[1], [0], [0], [1], [0, 0, 1, 1], [], []>} : vector<8x4xf32>, vector<4x128xf32>, vector<8x128xf32> -> vector<8x128xf32>
    %87 = arith.addf %84, %86 : vector<8x128xf32>
    %c64 = arith.constant 64 : index
    %c0_27 = arith.constant 0 : index
    %88 = vector.load %arg1[%c64, %c0_27] : memref<144x128xbf16, #tpu.memory_space<vmem>>, vector<32x128xbf16>
    %89 = arith.extf %88 : vector<32x128xbf16> to vector<32x128xf32>
    %90 = vector.extract_strided_slice %80 {offsets = [0, 0], sizes = [8, 32], strides = [1, 1]} : vector<8x128xf32> to vector<8x32xf32>
    %cst_28 = arith.constant dense<0.000000e+00> : vector<8x128xf32>
    %91 = tpu.matmul %90, %89, %cst_28 {dimension_numbers = #tpu.dot_dimension_numbers<[1], [0], [0], [1], [0, 0, 1, 1], [], []>} : vector<8x32xf32>, vector<32x128xf32>, vector<8x128xf32> -> vector<8x128xf32>
    %92 = arith.addf %87, %91 : vector<8x128xf32>
    %93 = vector.extract_strided_slice %7 {offsets = [6, 0], sizes = [1, 128], strides = [1, 1]} : vector<16x128xf32> to vector<1x128xf32>
    %94 = vector.broadcast %93 : vector<1x128xf32> to vector<8x128xf32>
    %95 = arith.addf %92, %94 : vector<8x128xf32>
    %cst_29 = arith.constant 0.000000e+00 : f32
    %96 = vector.broadcast %cst_29 : f32 to vector<8x128xf32>
    %97 = arith.maximumf %95, %96 : vector<8x128xf32>
    %98 = vector.extract_strided_slice %7 {offsets = [7, 0], sizes = [1, 128], strides = [1, 1]} : vector<16x128xf32> to vector<1x128xf32>
    %99 = vector.extract_strided_slice %7 {offsets = [8, 0], sizes = [1, 128], strides = [1, 1]} : vector<16x128xf32> to vector<1x128xf32>
    %cst_30 = arith.constant dense<0.000000e+00> : vector<128xf32>
    %100 = vector.multi_reduction <add>, %97, %cst_30 [0] : vector<8x128xf32> to vector<128xf32>
    %101 = vector.shape_cast %100 : vector<128xf32> to vector<1x128xf32>
    %cst_31 = arith.constant 8.000000e+00 : f32
    %102 = vector.broadcast %cst_31 : f32 to vector<1x128xf32>
    %103 = arith.divf %101, %102 : vector<1x128xf32>
    %104 = vector.broadcast %103 : vector<1x128xf32> to vector<8x128xf32>
    %105 = arith.subf %97, %104 : vector<8x128xf32>
    %106 = arith.mulf %105, %105 : vector<8x128xf32>
    %cst_32 = arith.constant dense<0.000000e+00> : vector<128xf32>
    %107 = vector.multi_reduction <add>, %106, %cst_32 [0] : vector<8x128xf32> to vector<128xf32>
    %108 = vector.shape_cast %107 : vector<128xf32> to vector<1x128xf32>
    %cst_33 = arith.constant 8.000000e+00 : f32
    %109 = vector.broadcast %cst_33 : f32 to vector<1x128xf32>
    %110 = arith.divf %108, %109 : vector<1x128xf32>
    %cst_34 = arith.constant 9.99999974E-6 : f32
    %111 = vector.broadcast %cst_34 : f32 to vector<1x128xf32>
    %112 = arith.addf %110, %111 : vector<1x128xf32>
    %113 = math.rsqrt %112 : vector<1x128xf32>
    %114 = vector.broadcast %113 : vector<1x128xf32> to vector<8x128xf32>
    %115 = arith.mulf %105, %114 : vector<8x128xf32>
    %116 = vector.broadcast %98 : vector<1x128xf32> to vector<8x128xf32>
    %117 = arith.mulf %116, %115 : vector<8x128xf32>
    %118 = vector.broadcast %99 : vector<1x128xf32> to vector<8x128xf32>
    %119 = arith.addf %117, %118 : vector<8x128xf32>
    %c24 = arith.constant 24 : index
    %c0_35 = arith.constant 0 : index
    %120 = vector.load %arg1[%c24, %c0_35] : memref<144x128xbf16, #tpu.memory_space<vmem>>, vector<8x128xbf16>
    %121 = arith.extf %120 : vector<8x128xbf16> to vector<8x128xf32>
    %122 = vector.extract_strided_slice %121 {offsets = [0, 0], sizes = [4, 128], strides = [1, 1]} : vector<8x128xf32> to vector<4x128xf32>
    %cst_36 = arith.constant dense<0.000000e+00> : vector<8x128xf32>
    %123 = tpu.matmul %3, %122, %cst_36 {dimension_numbers = #tpu.dot_dimension_numbers<[1], [0], [0], [1], [0, 0, 1, 1], [], []>} : vector<8x4xf32>, vector<4x128xf32>, vector<8x128xf32> -> vector<8x128xf32>
    %124 = vector.extract_strided_slice %121 {offsets = [4, 0], sizes = [4, 128], strides = [1, 1]} : vector<8x128xf32> to vector<4x128xf32>
    %cst_37 = arith.constant dense<0.000000e+00> : vector<8x128xf32>
    %125 = tpu.matmul %5, %124, %cst_37 {dimension_numbers = #tpu.dot_dimension_numbers<[1], [0], [0], [1], [0, 0, 1, 1], [], []>} : vector<8x4xf32>, vector<4x128xf32>, vector<8x128xf32> -> vector<8x128xf32>
    %126 = arith.addf %123, %125 : vector<8x128xf32>
    %c96 = arith.constant 96 : index
    %c0_38 = arith.constant 0 : index
    %127 = vector.load %arg1[%c96, %c0_38] : memref<144x128xbf16, #tpu.memory_space<vmem>>, vector<32x128xbf16>
    %128 = arith.extf %127 : vector<32x128xbf16> to vector<32x128xf32>
    %129 = vector.extract_strided_slice %119 {offsets = [0, 0], sizes = [8, 32], strides = [1, 1]} : vector<8x128xf32> to vector<8x32xf32>
    %cst_39 = arith.constant dense<0.000000e+00> : vector<8x128xf32>
    %130 = tpu.matmul %129, %128, %cst_39 {dimension_numbers = #tpu.dot_dimension_numbers<[1], [0], [0], [1], [0, 0, 1, 1], [], []>} : vector<8x32xf32>, vector<32x128xf32>, vector<8x128xf32> -> vector<8x128xf32>
    %131 = arith.addf %126, %130 : vector<8x128xf32>
    %132 = vector.extract_strided_slice %7 {offsets = [9, 0], sizes = [1, 128], strides = [1, 1]} : vector<16x128xf32> to vector<1x128xf32>
    %133 = vector.broadcast %132 : vector<1x128xf32> to vector<8x128xf32>
    %134 = arith.addf %131, %133 : vector<8x128xf32>
    %c0_40 = arith.constant 0 : index
    %c0_41 = arith.constant 0 : index
    %135 = vector.load %arg2[%c0_40, %c0_41] : memref<8x128xf32, #tpu.memory_space<vmem>>, vector<8x128xf32>
    tpu.vector_store %arg2[%c0_40, %c0_41], %134 {strides = array<i32>} : memref<8x128xf32, #tpu.memory_space<vmem>>, vector<8x128xf32>,
    return
  }
}

</mosaic_0001>

<llo_original>
// kernel: tpu_custom_call.1
$region0: #{tpu_custom_call.1}
  #allocation0 [shape = 'u32[]', space=smem, size = 0x4, offset = 0x4, fixed_abs, tag = 'smem constant byte address 0x4 - core index']
  #allocation1 [shape = 'u32[144,128]{1,0:T(1,128)}', space=vmem, size = 0x12000, scoped, tag = 'internal scratch']
  %s0 = inlined_call_operand.vmem [shape: f32[8,4], index: 0, kind: input, shape index: {}]
  %s1 = inlined_call_operand.hbm [shape: bf16[144,128], index: 1, kind: input, shape index: {}]
  %s2 = inlined_call_operand.hbm [shape: f32[8,128], index: 2, kind: output, shape index: {}]
  %s3 = sld [smem:[#allocation0]]
  $region22: #{tpu_custom_call.1} parent=0
    _
  %s5 = ssub.s32 1, %s3
  %s6 = scalar_select 0, %s5, %s3
  $region1: #{tpu_custom_call.1} parent=0
    #allocation2 [shape = 'u8[36864]{0}', space=vmem, size = 0x9000, scoped, tag = 'input window, operand 1, single buffered']
    #allocation3 [shape = 's32[1]{0}', space=sflag, size = 0x4, scoped, tag = 'scoped memory for tpu_custom_call.1']
    #allocation4 [shape = 's32[1]{0}', space=sflag, size = 0x4, scoped, tag = 'scoped memory for tpu_custom_call.1']
    #allocation5 [shape = 'u8[4096]{0}', space=vmem, size = 0x1000, scoped, tag = 'output window, operand 0, single buffered']
    %7 = vsyncpa [#allocation3], 0
    %8 = vsyncpa [#allocation4], 0
    // Predicated region
    $region2: #{tpu_custom_call.1} parent=1 // pred_check
      _
    $region3: #{tpu_custom_call.1} parent=1 // pred_check_branch
      %10 = sbr.rel (0) target = $region5
    $region4: #{tpu_custom_call.1} parent=1 // pred_region
      _
    $region5: #{tpu_custom_call.1} parent=1 // pred_fallthru
      _
    // Predicated region
    $region6: #{tpu_custom_call.1} parent=1 // pred_check
      _
    $region7: #{tpu_custom_call.1} parent=1 // pred_check_branch
      %12 = sbr.rel (0) target = $region9
    $region8: #{tpu_custom_call.1} parent=1 // pred_region
      %s14 = ssub.s32 1152, 1152
      %15 = vsyncadd [#allocation3], %s14
      %s16 = sshll.u32 [#allocation2], 4
      %s17 = int_to_ptr.vmem [resolvable:$true] %s16
      %22 = dma.hbm_to_vmem [thread:$0]  %s1, 1152, %s17, [#allocation3], 64, 64, 4
    $region9: #{tpu_custom_call.1} parent=1 // pred_fallthru
      _
    // Predicated region
    $region10: #{tpu_custom_call.1} parent=1 // pred_check
      _
    $region11: #{tpu_custom_call.1} parent=1 // pred_check_branch
      %24 = sbr.rel (0) target = $region13
    $region12: #{tpu_custom_call.1} parent=1 // pred_region
      %25 = dma.done [#allocation3], 1152
    $region13: #{tpu_custom_call.1} parent=1 // pred_fallthru
      _
    %v26 = vld [vmem:[%s0] sm:$0xff]
    %v27 = vmul.f32 %v26, -1.0
    %v28 = vmul.f32 %v27, 1.442695
    %v29 = vpow.pop %v28
    %v30 = vsub.f32 1.0, %v29
    %v31 = vld [vmem:[#allocation2 + $0x40] sm:$0xf]
    %v32 = vld [vmem:[#allocation2 + $0x44] sm:$0xf]
    %v33 = vunpack.c.l.bf16 %v31
    %v34 = vunpack.c.l.bf16 %v32
    %v35 = vld [vmem:[#allocation2] sm:$0xf]
    %v36 = vunpack.c.l.bf16 %v35
    %v38 = vrot.slane %v36, 4
    %vm39 = vcmask 31744
    %v41 = vsel %vm39, %v30, 0
    %vm43 = vcmask 1043456
    %v44 = vsel %vm43, %v38, 0
    %46 = vmatprep.subr.mxu0 0.0
    %47 = vmatpush1.msra.mxu0 %v44
    %48 = vmatprep.subr.mxu0 0.0
    %49 = vmatpush1.msra.mxu0 0.0
    %50 = vmatprep.subr.mxu0 0.0
    %51 = vmatpush1.msra.mxu0 0.0
    %52 = vmatprep.subr.mxu0 0.0
    %53 = vmatpush1.msra.mxu0 0.0
    %54 = vmatprep.subr.mxu0 0.0
    %55 = vmatpush1.msra.mxu0 0.0
    %56 = vmatprep.subr.mxu0 0.0
    %57 = vmatpush1.msra.mxu0 0.0
    %58 = vmatprep.subr.mxu0 0.0
    %59 = vmatpush1.msra.mxu0 0.0
    %60 = vmatprep.subr.mxu0 0.0
    %61 = vmatpush1.msra.mxu0 0.0
    %62 = vmatprep.subr.mxu0 0.0
    %63 = vmatpush1.msra.mxu0 0.0
    %64 = vmatprep.subr.mxu0 0.0
    %65 = vmatpush1.msra.mxu0 0.0
    %66 = vmatprep.subr.mxu0 0.0
    %67 = vmatpush1.msra.mxu0 0.0
    %68 = vmatprep.subr.mxu0 0.0
    %69 = vmatpush1.msra.mxu0 0.0
    %70 = vmatprep.subr.mxu0 0.0
    %71 = vmatpush1.msra.mxu0 0.0
    %72 = vmatprep.subr.mxu0 0.0
    %73 = vmatpush1.msra.mxu0 0.0
    %74 = vmatprep.subr.mxu0 0.0
    %75 = vmatpush1.msra.mxu0 0.0
    %76 = vmatprep.subr.mxu0 0.0
    %77 = vmatpush1.msra.mxu0 0.0
    %78 = vmatprep.subr.mxu0 0.0
    %79 = vmatpush1.msra.mxu0 0.0
    %80 = vmatprep.subr.mxu0 0.0
    %81 = vmatpush1.msra.mxu0 0.0
    %82 = vmatprep.subr.mxu0 0.0
    %83 = vmatpush1.msra.mxu0 0.0
    %84 = vmatprep.subr.mxu0 0.0
    %85 = vmatpush1.msra.mxu0 0.0
    %86 = vmatprep.subr.mxu0 0.0
    %87 = vmatpush1.msra.mxu0 0.0
    %88 = vmatprep.subr.mxu0 0.0
    %89 = vmatpush1.msra.mxu0 0.0
    %90 = vmatprep.subr.mxu0 0.0
    %91 = vmatpush1.msra.mxu0 0.0
    %92 = vmatprep.subr.mxu0 0.0
    %93 = vmatpush1.msra.mxu0 0.0
    %94 = vmatprep.subr.mxu0 0.0
    %95 = vmatpush1.msra.mxu0 0.0
    %96 = vmatprep.subr.mxu0 0.0
    %97 = vmatpush1.msra.mxu0 0.0
    %98 = vmatprep.subr.mxu0 0.0
    %99 = vmatpush1.msra.mxu0 0.0
    %100 = vmatprep.subr.mxu0 0.0
    %101 = vmatpush1.msra.mxu0 0.0
    %102 = vmatprep.subr.mxu0 0.0
    %103 = vmatpush1.msra.mxu0 0.0
    %104 = vmatprep.subr.mxu0 0.0
    %105 = vmatpush1.msra.mxu0 0.0
    %106 = vmatprep.subr.mxu0 0.0
    %107 = vmatpush1.msra.mxu0 0.0
    %108 = vmatprep.subr.mxu0 0.0
    %109 = vmatpush1.msra.mxu0 0.0
    %110 = vmatprep.mubr.f32.mxu0 0.0
    %111 = vmatmul.mubr.f32.gmra.mrb[0].mxu0 %v41
    %v112 = vpop.f32.mrb[0].mxu0
    %v113 = vadd.f32 0.0, %v112
    %v114 = vpop.f32.mrb[0].mxu0
    %115 = vdwg.mxu0
    %v117 = vsel %vm39, %v29, 0
    %v119 = vsel %vm43, %v36, 0
    %121 = vmatprep.subr.mxu0 0.0
    %122 = vmatpush1.msra.mxu0 %v119
    %123 = vmatprep.subr.mxu0 0.0
    %124 = vmatpush1.msra.mxu0 0.0
    %125 = vmatprep.subr.mxu0 0.0
    %126 = vmatpush1.msra.mxu0 0.0
    %127 = vmatprep.subr.mxu0 0.0
    %128 = vmatpush1.msra.mxu0 0.0
    %129 = vmatprep.subr.mxu0 0.0
    %130 = vmatpush1.msra.mxu0 0.0
    %131 = vmatprep.subr.mxu0 0.0
    %132 = vmatpush1.msra.mxu0 0.0
    %133 = vmatprep.subr.mxu0 0.0
    %134 = vmatpush1.msra.mxu0 0.0
    %135 = vmatprep.subr.mxu0 0.0
    %136 = vmatpush1.msra.mxu0 0.0
    %137 = vmatprep.subr.mxu0 0.0
    %138 = vmatpush1.msra.mxu0 0.0
    %139 = vmatprep.subr.mxu0 0.0
    %140 = vmatpush1.msra.mxu0 0.0
    %141 = vmatprep.subr.mxu0 0.0
    %142 = vmatpush1.msra.mxu0 0.0
    %143 = vmatprep.subr.mxu0 0.0
    %144 = vmatpush1.msra.mxu0 0.0
    %145 = vmatprep.subr.mxu0 0.0
    %146 = vmatpush1.msra.mxu0 0.0
    %147 = vmatprep.subr.mxu0 0.0
    %148 = vmatpush1.msra.mxu0 0.0
    %149 = vmatprep.subr.mxu0 0.0
    %150 = vmatpush1.msra.mxu0 0.0
    %151 = vmatprep.subr.mxu0 0.0
    %152 = vmatpush1.msra.mxu0 0.0
    %153 = vmatprep.subr.mxu0 0.0
    %154 = vmatpush1.msra.mxu0 0.0
    %155 = vmatprep.subr.mxu0 0.0
    %156 = vmatpush1.msra.mxu0 0.0
    %157 = vmatprep.subr.mxu0 0.0
    %158 = vmatpush1.msra.mxu0 0.0
    %159 = vmatprep.subr.mxu0 0.0
    %160 = vmatpush1.msra.mxu0 0.0
    %161 = vmatprep.subr.mxu0 0.0
    %162 = vmatpush1.msra.mxu0 0.0
    %163 = vmatprep.subr.mxu0 0.0
    %164 = vmatpush1.msra.mxu0 0.0
    %165 = vmatprep.subr.mxu0 0.0
    %166 = vmatpush1.msra.mxu0 0.0
    %167 = vmatprep.subr.mxu0 0.0
    %168 = vmatpush1.msra.mxu0 0.0
    %169 = vmatprep.subr.mxu0 0.0
    %170 = vmatpush1.msra.mxu0 0.0
    %171 = vmatprep.subr.mxu0 0.0
    %172 = vmatpush1.msra.mxu0 0.0
    %173 = vmatprep.subr.mxu0 0.0
    %174 = vmatpush1.msra.mxu0 0.0
    %175 = vmatprep.subr.mxu0 0.0
    %176 = vmatpush1.msra.mxu0 0.0
    %177 = vmatprep.subr.mxu0 0.0
    %178 = vmatpush1.msra.mxu0 0.0
    %179 = vmatprep.subr.mxu0 0.0
    %180 = vmatpush1.msra.mxu0 0.0
    %181 = vmatprep.subr.mxu0 0.0
    %182 = vmatpush1.msra.mxu0 0.0
    %183 = vmatprep.subr.mxu0 0.0
    %184 = vmatpush1.msra.mxu0 0.0
    %185 = vmatprep.mubr.f32.mxu0 0.0
    %186 = vmatmul.mubr.f32.gmra.mrb[0].mxu0 %v117
    %v187 = vpop.f32.mrb[0].mxu0
    %v188 = vadd.f32 %v113, %v187
    %v189 = vpop.f32.mrb[0].mxu0
    %190 = vdwg.mxu0
    %v191 = vlaneseq
    %v192 = vshrl.u32 %v191, 7
    %v193 = vsub.s32 0, %v192
    %v194 = vrot.slane %v33, %v193
    %v195 = vadd.f32 %v188, %v194
    %v196 = vmax.f32 %v195, 0.0
    %v197 = vrot.slane %v196, 4
    %v198 = vadd.f32 %v196, %v197
    %v199 = vrot.slane %v198, 2
    %v200 = vadd.f32 %v198, %v199
    %v201 = vrot.slane %v200, 1
    %v202 = vadd.f32 %v200, %v201
    %v203 = vrcp.pop 8.0
    %v204 = vmul.f32 %v202, %v203
    %v205 = vsub.f32 %v196, %v204
    %v206 = vmul.f32 %v205, %v205
    %v207 = vrot.slane %v206, 4
    %v208 = vadd.f32 %v206, %v207
    %v209 = vrot.slane %v208, 2
    %v210 = vadd.f32 %v208, %v209
    %v211 = vrot.slane %v210, 1
    %v212 = vadd.f32 %v210, %v211
    %v213 = vmul.f32 %v212, %v203
    %v214 = vadd.f32 %v213, 1e-05
    %v215 = vrsqrt.pop %v214
    %v216 = vmul.f32 %v205, %v215
    %v217 = vlaneseq
    %v218 = vshrl.u32 %v217, 7
    %v219 = vsub.s32 1, %v218
    %v220 = vrot.slane %v33, %v219
    %v221 = vmul.f32 %v220, %v216
    %v222 = vlaneseq
    %v223 = vshrl.u32 %v222, 7
    %v224 = vsub.s32 2, %v223
    %v225 = vrot.slane %v33, %v224
    %v226 = vadd.f32 %v221, %v225
    %v227 = vld [vmem:[#allocation2 + $0x4] sm:$0xf]
    %v228 = vunpack.c.l.bf16 %v227
    %v230 = vrot.slane %v228, 4
    %v231 = vsel %vm43, %v230, 0
    %233 = vmatprep.subr.mxu0 0.0
    %234 = vmatpush1.msra.mxu0 %v231
    %235 = vmatprep.subr.mxu0 0.0
    %236 = vmatpush1.msra.mxu0 0.0
    %237 = vmatprep.subr.mxu0 0.0
    %238 = vmatpush1.msra.mxu0 0.0
    %239 = vmatprep.subr.mxu0 0.0
    %240 = vmatpush1.msra.mxu0 0.0
    %241 = vmatprep.subr.mxu0 0.0
    %242 = vmatpush1.msra.mxu0 0.0
    %243 = vmatprep.subr.mxu0 0.0
    %244 = vmatpush1.msra.mxu0 0.0
    %245 = vmatprep.subr.mxu0 0.0
    %246 = vmatpush1.msra.mxu0 0.0
    %247 = vmatprep.subr.mxu0 0.0
    %248 = vmatpush1.msra.mxu0 0.0
    %249 = vmatprep.subr.mxu0 0.0
    %250 = vmatpush1.msra.mxu0 0.0
    %251 = vmatprep.subr.mxu0 0.0
    %252 = vmatpush1.msra.mxu0 0.0
    %253 = vmatprep.subr.mxu0 0.0
    %254 = vmatpush1.msra.mxu0 0.0
    %255 = vmatprep.subr.mxu0 0.0
    %256 = vmatpush1.msra.mxu0 0.0
    %257 = vmatprep.subr.mxu0 0.0
    %258 = vmatpush1.msra.mxu0 0.0
    %259 = vmatprep.subr.mxu0 0.0
    %260 = vmatpush1.msra.mxu0 0.0
    %261 = vmatprep.subr.mxu0 0.0
    %262 = vmatpush1.msra.mxu0 0.0
    %263 = vmatprep.subr.mxu0 0.0
    %264 = vmatpush1.msra.mxu0 0.0
    %265 = vmatprep.subr.mxu0 0.0
    %266 = vmatpush1.msra.mxu0 0.0
    %267 = vmatprep.subr.mxu0 0.0
    %268 = vmatpush1.msra.mxu0 0.0
    %269 = vmatprep.subr.mxu0 0.0
    %270 = vmatpush1.msra.mxu0 0.0
    %271 = vmatprep.subr.mxu0 0.0
    %272 = vmatpush1.msra.mxu0 0.0
    %273 = vmatprep.subr.mxu0 0.0
    %274 = vmatpush1.msra.mxu0 0.0
    %275 = vmatprep.subr.mxu0 0.0
    %276 = vmatpush1.msra.mxu0 0.0
    %277 = vmatprep.subr.mxu0 0.0
    %278 = vmatpush1.msra.mxu0 0.0
    %279 = vmatprep.subr.mxu0 0.0
    %280 = vmatpush1.msra.mxu0 0.0
    %281 = vmatprep.subr.mxu0 0.0
    %282 = vmatpush1.msra.mxu0 0.0
    %283 = vmatprep.subr.mxu0 0.0
    %284 = vmatpush1.msra.mxu0 0.0
    %285 = vmatprep.subr.mxu0 0.0
    %286 = vmatpush1.msra.mxu0 0.0
    %287 = vmatprep.subr.mxu0 0.0
    %288 = vmatpush1.msra.mxu0 0.0
    %289 = vmatprep.subr.mxu0 0.0
    %290 = vmatpush1.msra.mxu0 0.0
    %291 = vmatprep.subr.mxu0 0.0
    %292 = vmatpush1.msra.mxu0 0.0
    %293 = vmatprep.subr.mxu0 0.0
    %294 = vmatpush1.msra.mxu0 0.0
    %295 = vmatprep.subr.mxu0 0.0
    %296 = vmatpush1.msra.mxu0 0.0
    %297 = vmatprep.mubr.f32.mxu0 0.0
    %298 = vmatmul.mubr.f32.gmra.mrb[0].mxu0 %v41
    %v299 = vpop.f32.mrb[0].mxu0
    %v300 = vadd.f32 0.0, %v299
    %v301 = vpop.f32.mrb[0].mxu0
    %302 = vdwg.mxu0
    %v303 = vsel %vm43, %v228, 0
    %305 = vmatprep.subr.mxu0 0.0
    %306 = vmatpush1.msra.mxu0 %v303
    %307 = vmatprep.subr.mxu0 0.0
    %308 = vmatpush1.msra.mxu0 0.0
    %309 = vmatprep.subr.mxu0 0.0
    %310 = vmatpush1.msra.mxu0 0.0
    %311 = vmatprep.subr.mxu0 0.0
    %312 = vmatpush1.msra.mxu0 0.0
    %313 = vmatprep.subr.mxu0 0.0
    %314 = vmatpush1.msra.mxu0 0.0
    %315 = vmatprep.subr.mxu0 0.0
    %316 = vmatpush1.msra.mxu0 0.0
    %317 = vmatprep.subr.mxu0 0.0
    %318 = vmatpush1.msra.mxu0 0.0
    %319 = vmatprep.subr.mxu0 0.0
    %320 = vmatpush1.msra.mxu0 0.0
    %321 = vmatprep.subr.mxu0 0.0
    %322 = vmatpush1.msra.mxu0 0.0
    %323 = vmatprep.subr.mxu0 0.0
    %324 = vmatpush1.msra.mxu0 0.0
    %325 = vmatprep.subr.mxu0 0.0
    %326 = vmatpush1.msra.mxu0 0.0
    %327 = vmatprep.subr.mxu0 0.0
    %328 = vmatpush1.msra.mxu0 0.0
    %329 = vmatprep.subr.mxu0 0.0
    %330 = vmatpush1.msra.mxu0 0.0
    %331 = vmatprep.subr.mxu0 0.0
    %332 = vmatpush1.msra.mxu0 0.0
    %333 = vmatprep.subr.mxu0 0.0
    %334 = vmatpush1.msra.mxu0 0.0
    %335 = vmatprep.subr.mxu0 0.0
    %336 = vmatpush1.msra.mxu0 0.0
    %337 = vmatprep.subr.mxu0 0.0
    %338 = vmatpush1.msra.mxu0 0.0
    %339 = vmatprep.subr.mxu0 0.0
    %340 = vmatpush1.msra.mxu0 0.0
    %341 = vmatprep.subr.mxu0 0.0
    %342 = vmatpush1.msra.mxu0 0.0
    %343 = vmatprep.subr.mxu0 0.0
    %344 = vmatpush1.msra.mxu0 0.0
    %345 = vmatprep.subr.mxu0 0.0
    %346 = vmatpush1.msra.mxu0 0.0
    %347 = vmatprep.subr.mxu0 0.0
    %348 = vmatpush1.msra.mxu0 0.0
    %349 = vmatprep.subr.mxu0 0.0
    %350 = vmatpush1.msra.mxu0 0.0
    %351 = vmatprep.subr.mxu0 0.0
    %352 = vmatpush1.msra.mxu0 0.0
    %353 = vmatprep.subr.mxu0 0.0
    %354 = vmatpush1.msra.mxu0 0.0
    %355 = vmatprep.subr.mxu0 0.0
    %356 = vmatpush1.msra.mxu0 0.0
    %357 = vmatprep.subr.mxu0 0.0
    %358 = vmatpush1.msra.mxu0 0.0
    %359 = vmatprep.subr.mxu0 0.0
    %360 = vmatpush1.msra.mxu0 0.0
    %361 = vmatprep.subr.mxu0 0.0
    %362 = vmatpush1.msra.mxu0 0.0
    %363 = vmatprep.subr.mxu0 0.0
    %364 = vmatpush1.msra.mxu0 0.0
    %365 = vmatprep.subr.mxu0 0.0
    %366 = vmatpush1.msra.mxu0 0.0
    %367 = vmatprep.subr.mxu0 0.0
    %368 = vmatpush1.msra.mxu0 0.0
    %369 = vmatprep.mubr.f32.mxu0 0.0
    %370 = vmatmul.mubr.f32.gmra.mrb[0].mxu0 %v117
    %v371 = vpop.f32.mrb[0].mxu0
    %v372 = vadd.f32 %v300, %v371
    %v373 = vpop.f32.mrb[0].mxu0
    %374 = vdwg.mxu0
    %v375 = vld [vmem:[#allocation2 + $0x10] sm:$0xf]
    %v376 = vld [vmem:[#allocation2 + $0x14] sm:$0xf]
    %v377 = vld [vmem:[#allocation2 + $0x18] sm:$0xf]
    %v378 = vld [vmem:[#allocation2 + $0x1c] sm:$0xf]
    %v379 = vunpack.c.l.bf16 %v375
    %v380 = vunpack.c.l.bf16 %v376
    %v381 = vunpack.c.l.bf16 %v377
    %v382 = vunpack.c.l.bf16 %v378
    %vm383 = vcmask 261120
    %v385 = vsel %vm383, %v226, 0
    %387 = vmatprep.subr.mxu0 0.0
    %388 = vmatpush1.msra.mxu0 %v379
    %389 = vmatprep.subr.mxu0 0.0
    %390 = vmatpush1.msra.mxu0 %v380
    %391 = vmatprep.subr.mxu0 0.0
    %392 = vmatpush1.msra.mxu0 %v381
    %393 = vmatprep.subr.mxu0 0.0
    %394 = vmatpush1.msra.mxu0 %v382
    %395 = vmatprep.subr.mxu0 0.0
    %396 = vmatpush1.msra.mxu0 0.0
    %397 = vmatprep.subr.mxu0 0.0
    %398 = vmatpush1.msra.mxu0 0.0
    %399 = vmatprep.subr.mxu0 0.0
    %400 = vmatpush1.msra.mxu0 0.0
    %401 = vmatprep.subr.mxu0 0.0
    %402 = vmatpush1.msra.mxu0 0.0
    %403 = vmatprep.subr.mxu0 0.0
    %404 = vmatpush1.msra.mxu0 0.0
    %405 = vmatprep.subr.mxu0 0.0
    %406 = vmatpush1.msra.mxu0 0.0
    %407 = vmatprep.subr.mxu0 0.0
    %408 = vmatpush1.msra.mxu0 0.0
    %409 = vmatprep.subr.mxu0 0.0
    %410 = vmatpush1.msra.mxu0 0.0
    %411 = vmatprep.subr.mxu0 0.0
    %412 = vmatpush1.msra.mxu0 0.0
    %413 = vmatprep.subr.mxu0 0.0
    %414 = vmatpush1.msra.mxu0 0.0
    %415 = vmatprep.subr.mxu0 0.0
    %416 = vmatpush1.msra.mxu0 0.0
    %417 = vmatprep.subr.mxu0 0.0
    %418 = vmatpush1.msra.mxu0 0.0
    %419 = vmatprep.subr.mxu0 0.0
    %420 = vmatpush1.msra.mxu0 0.0
    %421 = vmatprep.subr.mxu0 0.0
    %422 = vmatpush1.msra.mxu0 0.0
    %423 = vmatprep.subr.mxu0 0.0
    %424 = vmatpush1.msra.mxu0 0.0
    %425 = vmatprep.subr.mxu0 0.0
    %426 = vmatpush1.msra.mxu0 0.0
    %427 = vmatprep.subr.mxu0 0.0
    %428 = vmatpush1.msra.mxu0 0.0
    %429 = vmatprep.subr.mxu0 0.0
    %430 = vmatpush1.msra.mxu0 0.0
    %431 = vmatprep.subr.mxu0 0.0
    %432 = vmatpush1.msra.mxu0 0.0
    %433 = vmatprep.subr.mxu0 0.0
    %434 = vmatpush1.msra.mxu0 0.0
    %435 = vmatprep.subr.mxu0 0.0
    %436 = vmatpush1.msra.mxu0 0.0
    %437 = vmatprep.subr.mxu0 0.0
    %438 = vmatpush1.msra.mxu0 0.0
    %439 = vmatprep.subr.mxu0 0.0
    %440 = vmatpush1.msra.mxu0 0.0
    %441 = vmatprep.subr.mxu0 0.0
    %442 = vmatpush1.msra.mxu0 0.0
    %443 = vmatprep.subr.mxu0 0.0
    %444 = vmatpush1.msra.mxu0 0.0
    %445 = vmatprep.subr.mxu0 0.0
    %446 = vmatpush1.msra.mxu0 0.0
    %447 = vmatprep.subr.mxu0 0.0
    %448 = vmatpush1.msra.mxu0 0.0
    %449 = vmatprep.subr.mxu0 0.0
    %450 = vmatpush1.msra.mxu0 0.0
    %451 = vmatprep.mubr.f32.mxu0 0.0
    %452 = vmatmul.mubr.f32.gmra.mrb[0].mxu0 %v385
    %v453 = vpop.f32.mrb[0].mxu0
    %v454 = vadd.f32 0.0, %v453
    %v455 = vpop.f32.mrb[0].mxu0
    %456 = vdwg.mxu0
    %v457 = vadd.f32 %v372, %v454
    %v458 = vlaneseq
    %v459 = vshrl.u32 %v458, 7
    %v460 = vsub.s32 3, %v459
    %v461 = vrot.slane %v33, %v460
    %v462 = vadd.f32 %v457, %v461
    %v463 = vmax.f32 %v462, 0.0
    %v464 = vrot.slane %v463, 4
    %v465 = vadd.f32 %v463, %v464
    %v466 = vrot.slane %v465, 2
    %v467 = vadd.f32 %v465, %v466
    %v468 = vrot.slane %v467, 1
    %v469 = vadd.f32 %v467, %v468
    %v470 = vmul.f32 %v469, %v203
    %v471 = vsub.f32 %v463, %v470
    %v472 = vmul.f32 %v471, %v471
    %v473 = vrot.slane %v472, 4
    %v474 = vadd.f32 %v472, %v473
    %v475 = vrot.slane %v474, 2
    %v476 = vadd.f32 %v474, %v475
    %v477 = vrot.slane %v476, 1
    %v478 = vadd.f32 %v476, %v477
    %v479 = vmul.f32 %v478, %v203
    %v480 = vadd.f32 %v479, 1e-05
    %v481 = vrsqrt.pop %v480
    %v482 = vmul.f32 %v471, %v481
    %v483 = vlaneseq
    %v484 = vshrl.u32 %v483, 7
    %v485 = vsub.s32 4, %v484
    %v486 = vrot.slane %v33, %v485
    %v487 = vmul.f32 %v486, %v482
    %v488 = vlaneseq
    %v489 = vshrl.u32 %v488, 7
    %v490 = vsub.s32 5, %v489
    %v491 = vrot.slane %v33, %v490
    %v492 = vadd.f32 %v487, %v491
    %v493 = vld [vmem:[#allocation2 + $0x8] sm:$0xf]
    %v494 = vunpack.c.l.bf16 %v493
    %v496 = vrot.slane %v494, 4
    %v497 = vsel %vm43, %v496, 0
    %499 = vmatprep.subr.mxu0 0.0
    %500 = vmatpush1.msra.mxu0 %v497
    %501 = vmatprep.subr.mxu0 0.0
    %502 = vmatpush1.msra.mxu0 0.0
    %503 = vmatprep.subr.mxu0 0.0
    %504 = vmatpush1.msra.mxu0 0.0
    %505 = vmatprep.subr.mxu0 0.0
    %506 = vmatpush1.msra.mxu0 0.0
    %507 = vmatprep.subr.mxu0 0.0
    %508 = vmatpush1.msra.mxu0 0.0
    %509 = vmatprep.subr.mxu0 0.0
    %510 = vmatpush1.msra.mxu0 0.0
    %511 = vmatprep.subr.mxu0 0.0
    %512 = vmatpush1.msra.mxu0 0.0
    %513 = vmatprep.subr.mxu0 0.0
    %514 = vmatpush1.msra.mxu0 0.0
    %515 = vmatprep.subr.mxu0 0.0
    %516 = vmatpush1.msra.mxu0 0.0
    %517 = vmatprep.subr.mxu0 0.0
    %518 = vmatpush1.msra.mxu0 0.0
    %519 = vmatprep.subr.mxu0 0.0
    %520 = vmatpush1.msra.mxu0 0.0
    %521 = vmatprep.subr.mxu0 0.0
    %522 = vmatpush1.msra.mxu0 0.0
    %523 = vmatprep.subr.mxu0 0.0
    %524 = vmatpush1.msra.mxu0 0.0
    %525 = vmatprep.subr.mxu0 0.0
    %526 = vmatpush1.msra.mxu0 0.0
    %527 = vmatprep.subr.mxu0 0.0
    %528 = vmatpush1.msra.mxu0 0.0
    %529 = vmatprep.subr.mxu0 0.0
    %530 = vmatpush1.msra.mxu0 0.0
    %531 = vmatprep.subr.mxu0 0.0
    %532 = vmatpush1.msra.mxu0 0.0
    %533 = vmatprep.subr.mxu0 0.0
    %534 = vmatpush1.msra.mxu0 0.0
    %535 = vmatprep.subr.mxu0 0.0
    %536 = vmatpush1.msra.mxu0 0.0
    %537 = vmatprep.subr.mxu0 0.0
    %538 = vmatpush1.msra.mxu0 0.0
    %539 = vmatprep.subr.mxu0 0.0
    %540 = vmatpush1.msra.mxu0 0.0
    %541 = vmatprep.subr.mxu0 0.0
    %542 = vmatpush1.msra.mxu0 0.0
    %543 = vmatprep.subr.mxu0 0.0
    %544 = vmatpush1.msra.mxu0 0.0
    %545 = vmatprep.subr.mxu0 0.0
    %546 = vmatpush1.msra.mxu0 0.0
    %547 = vmatprep.subr.mxu0 0.0
    %548 = vmatpush1.msra.mxu0 0.0
    %549 = vmatprep.subr.mxu0 0.0
    %550 = vmatpush1.msra.mxu0 0.0
    %551 = vmatprep.subr.mxu0 0.0
    %552 = vmatpush1.msra.mxu0 0.0
    %553 = vmatprep.subr.mxu0 0.0
    %554 = vmatpush1.msra.mxu0 0.0
    %555 = vmatprep.subr.mxu0 0.0
    %556 = vmatpush1.msra.mxu0 0.0
    %557 = vmatprep.subr.mxu0 0.0
    %558 = vmatpush1.msra.mxu0 0.0
    %559 = vmatprep.subr.mxu0 0.0
    %560 = vmatpush1.msra.mxu0 0.0
    %561 = vmatprep.subr.mxu0 0.0
    %562 = vmatpush1.msra.mxu0 0.0
    %563 = vmatprep.mubr.f32.mxu0 0.0
    %564 = vmatmul.mubr.f32.gmra.mrb[0].mxu0 %v41
    %v565 = vpop.f32.mrb[0].mxu0
    %v566 = vadd.f32 0.0, %v565
    %v567 = vpop.f32.mrb[0].mxu0
    %568 = vdwg.mxu0
    %v569 = vsel %vm43, %v494, 0
    %571 = vmatprep.subr.mxu0 0.0
    %572 = vmatpush1.msra.mxu0 %v569
    %573 = vmatprep.subr.mxu0 0.0
    %574 = vmatpush1.msra.mxu0 0.0
    %575 = vmatprep.subr.mxu0 0.0
    %576 = vmatpush1.msra.mxu0 0.0
    %577 = vmatprep.subr.mxu0 0.0
    %578 = vmatpush1.msra.mxu0 0.0
    %579 = vmatprep.subr.mxu0 0.0
    %580 = vmatpush1.msra.mxu0 0.0
    %581 = vmatprep.subr.mxu0 0.0
    %582 = vmatpush1.msra.mxu0 0.0
    %583 = vmatprep.subr.mxu0 0.0
    %584 = vmatpush1.msra.mxu0 0.0
    %585 = vmatprep.subr.mxu0 0.0
    %586 = vmatpush1.msra.mxu0 0.0
    %587 = vmatprep.subr.mxu0 0.0
    %588 = vmatpush1.msra.mxu0 0.0
    %589 = vmatprep.subr.mxu0 0.0
    %590 = vmatpush1.msra.mxu0 0.0
    %591 = vmatprep.subr.mxu0 0.0
    %592 = vmatpush1.msra.mxu0 0.0
    %593 = vmatprep.subr.mxu0 0.0
    %594 = vmatpush1.msra.mxu0 0.0
    %595 = vmatprep.subr.mxu0 0.0
    %596 = vmatpush1.msra.mxu0 0.0
    %597 = vmatprep.subr.mxu0 0.0
    %598 = vmatpush1.msra.mxu0 0.0
    %599 = vmatprep.subr.mxu0 0.0
    %600 = vmatpush1.msra.mxu0 0.0
    %601 = vmatprep.subr.mxu0 0.0
    %602 = vmatpush1.msra.mxu0 0.0
    %603 = vmatprep.subr.mxu0 0.0
    %604 = vmatpush1.msra.mxu0 0.0
    %605 = vmatprep.subr.mxu0 0.0
    %606 = vmatpush1.msra.mxu0 0.0
    %607 = vmatprep.subr.mxu0 0.0
    %608 = vmatpush1.msra.mxu0 0.0
    %609 = vmatprep.subr.mxu0 0.0
    %610 = vmatpush1.msra.mxu0 0.0
    %611 = vmatprep.subr.mxu0 0.0
    %612 = vmatpush1.msra.mxu0 0.0
    %613 = vmatprep.subr.mxu0 0.0
    %614 = vmatpush1.msra.mxu0 0.0
    %615 = vmatprep.subr.mxu0 0.0
    %616 = vmatpush1.msra.mxu0 0.0
    %617 = vmatprep.subr.mxu0 0.0
    %618 = vmatpush1.msra.mxu0 0.0
    %619 = vmatprep.subr.mxu0 0.0
    %620 = vmatpush1.msra.mxu0 0.0
    %621 = vmatprep.subr.mxu0 0.0
    %622 = vmatpush1.msra.mxu0 0.0
    %623 = vmatprep.subr.mxu0 0.0
    %624 = vmatpush1.msra.mxu0 0.0
    %625 = vmatprep.subr.mxu0 0.0
    %626 = vmatpush1.msra.mxu0 0.0
    %627 = vmatprep.subr.mxu0 0.0
    %628 = vmatpush1.msra.mxu0 0.0
    %629 = vmatprep.subr.mxu0 0.0
    %630 = vmatpush1.msra.mxu0 0.0
    %631 = vmatprep.subr.mxu0 0.0
    %632 = vmatpush1.msra.mxu0 0.0
    %633 = vmatprep.subr.mxu0 0.0
    %634 = vmatpush1.msra.mxu0 0.0
    %635 = vmatprep.mubr.f32.mxu0 0.0
    %636 = vmatmul.mubr.f32.gmra.mrb[0].mxu0 %v117
    %v637 = vpop.f32.mrb[0].mxu0
    %v638 = vadd.f32 %v566, %v637
    %v639 = vpop.f32.mrb[0].mxu0
    %640 = vdwg.mxu0
    %v641 = vld [vmem:[#allocation2 + $0x20] sm:$0xf]
    %v642 = vld [vmem:[#allocation2 + $0x24] sm:$0xf]
    %v643 = vld [vmem:[#allocation2 + $0x28] sm:$0xf]
    %v644 = vld [vmem:[#allocation2 + $0x2c] sm:$0xf]
    %v645 = vunpack.c.l.bf16 %v641
    %v646 = vunpack.c.l.bf16 %v642
    %v647 = vunpack.c.l.bf16 %v643
    %v648 = vunpack.c.l.bf16 %v644
    %v650 = vsel %vm383, %v492, 0
    %652 = vmatprep.subr.mxu0 0.0
    %653 = vmatpush1.msra.mxu0 %v645
    %654 = vmatprep.subr.mxu0 0.0
    %655 = vmatpush1.msra.mxu0 %v646
    %656 = vmatprep.subr.mxu0 0.0
    %657 = vmatpush1.msra.mxu0 %v647
    %658 = vmatprep.subr.mxu0 0.0
    %659 = vmatpush1.msra.mxu0 %v648
    %660 = vmatprep.subr.mxu0 0.0
    %661 = vmatpush1.msra.mxu0 0.0
    %662 = vmatprep.subr.mxu0 0.0
    %663 = vmatpush1.msra.mxu0 0.0
    %664 = vmatprep.subr.mxu0 0.0
    %665 = vmatpush1.msra.mxu0 0.0
    %666 = vmatprep.subr.mxu0 0.0
    %667 = vmatpush1.msra.mxu0 0.0
    %668 = vmatprep.subr.mxu0 0.0
    %669 = vmatpush1.msra.mxu0 0.0
    %670 = vmatprep.subr.mxu0 0.0
    %671 = vmatpush1.msra.mxu0 0.0
    %672 = vmatprep.subr.mxu0 0.0
    %673 = vmatpush1.msra.mxu0 0.0
    %674 = vmatprep.subr.mxu0 0.0
    %675 = vmatpush1.msra.mxu0 0.0
    %676 = vmatprep.subr.mxu0 0.0
    %677 = vmatpush1.msra.mxu0 0.0
    %678 = vmatprep.subr.mxu0 0.0
    %679 = vmatpush1.msra.mxu0 0.0
    %680 = vmatprep.subr.mxu0 0.0
    %681 = vmatpush1.msra.mxu0 0.0
    %682 = vmatprep.subr.mxu0 0.0
    %683 = vmatpush1.msra.mxu0 0.0
    %684 = vmatprep.subr.mxu0 0.0
    %685 = vmatpush1.msra.mxu0 0.0
    %686 = vmatprep.subr.mxu0 0.0
    %687 = vmatpush1.msra.mxu0 0.0
    %688 = vmatprep.subr.mxu0 0.0
    %689 = vmatpush1.msra.mxu0 0.0
    %690 = vmatprep.subr.mxu0 0.0
    %691 = vmatpush1.msra.mxu0 0.0
    %692 = vmatprep.subr.mxu0 0.0
    %693 = vmatpush1.msra.mxu0 0.0
    %694 = vmatprep.subr.mxu0 0.0
    %695 = vmatpush1.msra.mxu0 0.0
    %696 = vmatprep.subr.mxu0 0.0
    %697 = vmatpush1.msra.mxu0 0.0
    %698 = vmatprep.subr.mxu0 0.0
    %699 = vmatpush1.msra.mxu0 0.0
    %700 = vmatprep.subr.mxu0 0.0
    %701 = vmatpush1.msra.mxu0 0.0
    %702 = vmatprep.subr.mxu0 0.0
    %703 = vmatpush1.msra.mxu0 0.0
    %704 = vmatprep.subr.mxu0 0.0
    %705 = vmatpush1.msra.mxu0 0.0
    %706 = vmatprep.subr.mxu0 0.0
    %707 = vmatpush1.msra.mxu0 0.0
    %708 = vmatprep.subr.mxu0 0.0
    %709 = vmatpush1.msra.mxu0 0.0
    %710 = vmatprep.subr.mxu0 0.0
    %711 = vmatpush1.msra.mxu0 0.0
    %712 = vmatprep.subr.mxu0 0.0
    %713 = vmatpush1.msra.mxu0 0.0
    %714 = vmatprep.subr.mxu0 0.0
    %715 = vmatpush1.msra.mxu0 0.0
    %716 = vmatprep.mubr.f32.mxu0 0.0
    %717 = vmatmul.mubr.f32.gmra.mrb[0].mxu0 %v650
    %v718 = vpop.f32.mrb[0].mxu0
    %v719 = vadd.f32 0.0, %v718
    %v720 = vpop.f32.mrb[0].mxu0
    %721 = vdwg.mxu0
    %v722 = vadd.f32 %v638, %v719
    %v723 = vlaneseq
    %v724 = vshrl.u32 %v723, 7
    %v725 = vsub.s32 6, %v724
    %v726 = vrot.slane %v33, %v725
    %v727 = vadd.f32 %v722, %v726
    %v728 = vmax.f32 %v727, 0.0
    %v729 = vrot.slane %v728, 4
    %v730 = vadd.f32 %v728, %v729
    %v731 = vrot.slane %v730, 2
    %v732 = vadd.f32 %v730, %v731
    %v733 = vrot.slane %v732, 1
    %v734 = vadd.f32 %v732, %v733
    %v735 = vmul.f32 %v734, %v203
    %v736 = vsub.f32 %v728, %v735
    %v737 = vmul.f32 %v736, %v736
    %v738 = vrot.slane %v737, 4
    %v739 = vadd.f32 %v737, %v738
    %v740 = vrot.slane %v739, 2
    %v741 = vadd.f32 %v739, %v740
    %v742 = vrot.slane %v741, 1
    %v743 = vadd.f32 %v741, %v742
    %v744 = vmul.f32 %v743, %v203
    %v745 = vadd.f32 %v744, 1e-05
    %v746 = vrsqrt.pop %v745
    %v747 = vmul.f32 %v736, %v746
    %v748 = vlaneseq
    %v749 = vshrl.u32 %v748, 7
    %v750 = vsub.s32 7, %v749
    %v751 = vrot.slane %v33, %v750
    %v752 = vmul.f32 %v751, %v747
    %v753 = vlaneseq
    %v754 = vshrl.u32 %v753, 7
    %v755 = vsub.s32 0, %v754
    %v756 = vrot.slane %v34, %v755
    %v757 = vadd.f32 %v752, %v756
    %v758 = vld [vmem:[#allocation2 + $0xc] sm:$0xf]
    %v759 = vunpack.c.l.bf16 %v758
    %v761 = vrot.slane %v759, 4
    %v762 = vsel %vm43, %v761, 0
    %764 = vmatprep.subr.mxu0 0.0
    %765 = vmatpush1.msra.mxu0 %v762
    %766 = vmatprep.subr.mxu0 0.0
    %767 = vmatpush1.msra.mxu0 0.0
    %768 = vmatprep.subr.mxu0 0.0
    %769 = vmatpush1.msra.mxu0 0.0
    %770 = vmatprep.subr.mxu0 0.0
    %771 = vmatpush1.msra.mxu0 0.0
    %772 = vmatprep.subr.mxu0 0.0
    %773 = vmatpush1.msra.mxu0 0.0
    %774 = vmatprep.subr.mxu0 0.0
    %775 = vmatpush1.msra.mxu0 0.0
    %776 = vmatprep.subr.mxu0 0.0
    %777 = vmatpush1.msra.mxu0 0.0
    %778 = vmatprep.subr.mxu0 0.0
    %779 = vmatpush1.msra.mxu0 0.0
    %780 = vmatprep.subr.mxu0 0.0
    %781 = vmatpush1.msra.mxu0 0.0
    %782 = vmatprep.subr.mxu0 0.0
    %783 = vmatpush1.msra.mxu0 0.0
    %784 = vmatprep.subr.mxu0 0.0
    %785 = vmatpush1.msra.mxu0 0.0
    %786 = vmatprep.subr.mxu0 0.0
    %787 = vmatpush1.msra.mxu0 0.0
    %788 = vmatprep.subr.mxu0 0.0
    %789 = vmatpush1.msra.mxu0 0.0
    %790 = vmatprep.subr.mxu0 0.0
    %791 = vmatpush1.msra.mxu0 0.0
    %792 = vmatprep.subr.mxu0 0.0
    %793 = vmatpush1.msra.mxu0 0.0
    %794 = vmatprep.subr.mxu0 0.0
    %795 = vmatpush1.msra.mxu0 0.0
    %796 = vmatprep.subr.mxu0 0.0
    %797 = vmatpush1.msra.mxu0 0.0
    %798 = vmatprep.subr.mxu0 0.0
    %799 = vmatpush1.msra.mxu0 0.0
    %800 = vmatprep.subr.mxu0 0.0
    %801 = vmatpush1.msra.mxu0 0.0
    %802 = vmatprep.subr.mxu0 0.0
    %803 = vmatpush1.msra.mxu0 0.0
    %804 = vmatprep.subr.mxu0 0.0
    %805 = vmatpush1.msra.mxu0 0.0
    %806 = vmatprep.subr.mxu0 0.0
    %807 = vmatpush1.msra.mxu0 0.0
    %808 = vmatprep.subr.mxu0 0.0
    %809 = vmatpush1.msra.mxu0 0.0
    %810 = vmatprep.subr.mxu0 0.0
    %811 = vmatpush1.msra.mxu0 0.0
    %812 = vmatprep.subr.mxu0 0.0
    %813 = vmatpush1.msra.mxu0 0.0
    %814 = vmatprep.subr.mxu0 0.0
    %815 = vmatpush1.msra.mxu0 0.0
    %816 = vmatprep.subr.mxu0 0.0
    %817 = vmatpush1.msra.mxu0 0.0
    %818 = vmatprep.subr.mxu0 0.0
    %819 = vmatpush1.msra.mxu0 0.0
    %820 = vmatprep.subr.mxu0 0.0
    %821 = vmatpush1.msra.mxu0 0.0
    %822 = vmatprep.subr.mxu0 0.0
    %823 = vmatpush1.msra.mxu0 0.0
    %824 = vmatprep.subr.mxu0 0.0
    %825 = vmatpush1.msra.mxu0 0.0
    %826 = vmatprep.subr.mxu0 0.0
    %827 = vmatpush1.msra.mxu0 0.0
    %828 = vmatprep.mubr.f32.mxu0 0.0
    %829 = vmatmul.mubr.f32.gmra.mrb[0].mxu0 %v41
    %v830 = vpop.f32.mrb[0].mxu0
    %v831 = vadd.f32 0.0, %v830
    %v832 = vpop.f32.mrb[0].mxu0
    %833 = vdwg.mxu0
    %v834 = vsel %vm43, %v759, 0
    %836 = vmatprep.subr.mxu0 0.0
    %837 = vmatpush1.msra.mxu0 %v834
    %838 = vmatprep.subr.mxu0 0.0
    %839 = vmatpush1.msra.mxu0 0.0
    %840 = vmatprep.subr.mxu0 0.0
    %841 = vmatpush1.msra.mxu0 0.0
    %842 = vmatprep.subr.mxu0 0.0
    %843 = vmatpush1.msra.mxu0 0.0
    %844 = vmatprep.subr.mxu0 0.0
    %845 = vmatpush1.msra.mxu0 0.0
    %846 = vmatprep.subr.mxu0 0.0
    %847 = vmatpush1.msra.mxu0 0.0
    %848 = vmatprep.subr.mxu0 0.0
    %849 = vmatpush1.msra.mxu0 0.0
    %850 = vmatprep.subr.mxu0 0.0
    %851 = vmatpush1.msra.mxu0 0.0
    %852 = vmatprep.subr.mxu0 0.0
    %853 = vmatpush1.msra.mxu0 0.0
    %854 = vmatprep.subr.mxu0 0.0
    %855 = vmatpush1.msra.mxu0 0.0
    %856 = vmatprep.subr.mxu0 0.0
    %857 = vmatpush1.msra.mxu0 0.0
    %858 = vmatprep.subr.mxu0 0.0
    %859 = vmatpush1.msra.mxu0 0.0
    %860 = vmatprep.subr.mxu0 0.0
    %861 = vmatpush1.msra.mxu0 0.0
    %862 = vmatprep.subr.mxu0 0.0
    %863 = vmatpush1.msra.mxu0 0.0
    %864 = vmatprep.subr.mxu0 0.0
    %865 = vmatpush1.msra.mxu0 0.0
    %866 = vmatprep.subr.mxu0 0.0
    %867 = vmatpush1.msra.mxu0 0.0
    %868 = vmatprep.subr.mxu0 0.0
    %869 = vmatpush1.msra.mxu0 0.0
    %870 = vmatprep.subr.mxu0 0.0
    %871 = vmatpush1.msra.mxu0 0.0
    %872 = vmatprep.subr.mxu0 0.0
    %873 = vmatpush1.msra.mxu0 0.0
    %874 = vmatprep.subr.mxu0 0.0
    %875 = vmatpush1.msra.mxu0 0.0
    %876 = vmatprep.subr.mxu0 0.0
    %877 = vmatpush1.msra.mxu0 0.0
    %878 = vmatprep.subr.mxu0 0.0
    %879 = vmatpush1.msra.mxu0 0.0
    %880 = vmatprep.subr.mxu0 0.0
    %881 = vmatpush1.msra.mxu0 0.0
    %882 = vmatprep.subr.mxu0 0.0
    %883 = vmatpush1.msra.mxu0 0.0
    %884 = vmatprep.subr.mxu0 0.0
    %885 = vmatpush1.msra.mxu0 0.0
    %886 = vmatprep.subr.mxu0 0.0
    %887 = vmatpush1.msra.mxu0 0.0
    %888 = vmatprep.subr.mxu0 0.0
    %889 = vmatpush1.msra.mxu0 0.0
    %890 = vmatprep.subr.mxu0 0.0
    %891 = vmatpush1.msra.mxu0 0.0
    %892 = vmatprep.subr.mxu0 0.0
    %893 = vmatpush1.msra.mxu0 0.0
    %894 = vmatprep.subr.mxu0 0.0
    %895 = vmatpush1.msra.mxu0 0.0
    %896 = vmatprep.subr.mxu0 0.0
    %897 = vmatpush1.msra.mxu0 0.0
    %898 = vmatprep.subr.mxu0 0.0
    %899 = vmatpush1.msra.mxu0 0.0
    %900 = vmatprep.mubr.f32.mxu0 0.0
    %901 = vmatmul.mubr.f32.gmra.mrb[0].mxu0 %v117
    %v902 = vpop.f32.mrb[0].mxu0
    %v903 = vadd.f32 %v831, %v902
    %v904 = vpop.f32.mrb[0].mxu0
    %905 = vdwg.mxu0
    %v906 = vld [vmem:[#allocation2 + $0x30] sm:$0xf]
    %v907 = vld [vmem:[#allocation2 + $0x34] sm:$0xf]
    %v908 = vld [vmem:[#allocation2 + $0x38] sm:$0xf]
    %v909 = vld [vmem:[#allocation2 + $0x3c] sm:$0xf]
    %v910 = vunpack.c.l.bf16 %v906
    %v911 = vunpack.c.l.bf16 %v907
    %v912 = vunpack.c.l.bf16 %v908
    %v913 = vunpack.c.l.bf16 %v909
    %v915 = vsel %vm383, %v757, 0
    %917 = vmatprep.subr.mxu0 0.0
    %918 = vmatpush1.msra.mxu0 %v910
    %919 = vmatprep.subr.mxu0 0.0
    %920 = vmatpush1.msra.mxu0 %v911
    %921 = vmatprep.subr.mxu0 0.0
    %922 = vmatpush1.msra.mxu0 %v912
    %923 = vmatprep.subr.mxu0 0.0
    %924 = vmatpush1.msra.mxu0 %v913
    %925 = vmatprep.subr.mxu0 0.0
    %926 = vmatpush1.msra.mxu0 0.0
    %927 = vmatprep.subr.mxu0 0.0
    %928 = vmatpush1.msra.mxu0 0.0
    %929 = vmatprep.subr.mxu0 0.0
    %930 = vmatpush1.msra.mxu0 0.0
    %931 = vmatprep.subr.mxu0 0.0
    %932 = vmatpush1.msra.mxu0 0.0
    %933 = vmatprep.subr.mxu0 0.0
    %934 = vmatpush1.msra.mxu0 0.0
    %935 = vmatprep.subr.mxu0 0.0
    %936 = vmatpush1.msra.mxu0 0.0
    %937 = vmatprep.subr.mxu0 0.0
    %938 = vmatpush1.msra.mxu0 0.0
    %939 = vmatprep.subr.mxu0 0.0
    %940 = vmatpush1.msra.mxu0 0.0
    %941 = vmatprep.subr.mxu0 0.0
    %942 = vmatpush1.msra.mxu0 0.0
    %943 = vmatprep.subr.mxu0 0.0
    %944 = vmatpush1.msra.mxu0 0.0
    %945 = vmatprep.subr.mxu0 0.0
    %946 = vmatpush1.msra.mxu0 0.0
    %947 = vmatprep.subr.mxu0 0.0
    %948 = vmatpush1.msra.mxu0 0.0
    %949 = vmatprep.subr.mxu0 0.0
    %950 = vmatpush1.msra.mxu0 0.0
    %951 = vmatprep.subr.mxu0 0.0
    %952 = vmatpush1.msra.mxu0 0.0
    %953 = vmatprep.subr.mxu0 0.0
    %954 = vmatpush1.msra.mxu0 0.0
    %955 = vmatprep.subr.mxu0 0.0
    %956 = vmatpush1.msra.mxu0 0.0
    %957 = vmatprep.subr.mxu0 0.0
    %958 = vmatpush1.msra.mxu0 0.0
    %959 = vmatprep.subr.mxu0 0.0
    %960 = vmatpush1.msra.mxu0 0.0
    %961 = vmatprep.subr.mxu0 0.0
    %962 = vmatpush1.msra.mxu0 0.0
    %963 = vmatprep.subr.mxu0 0.0
    %964 = vmatpush1.msra.mxu0 0.0
    %965 = vmatprep.subr.mxu0 0.0
    %966 = vmatpush1.msra.mxu0 0.0
    %967 = vmatprep.subr.mxu0 0.0
    %968 = vmatpush1.msra.mxu0 0.0
    %969 = vmatprep.subr.mxu0 0.0
    %970 = vmatpush1.msra.mxu0 0.0
    %971 = vmatprep.subr.mxu0 0.0
    %972 = vmatpush1.msra.mxu0 0.0
    %973 = vmatprep.subr.mxu0 0.0
    %974 = vmatpush1.msra.mxu0 0.0
    %975 = vmatprep.subr.mxu0 0.0
    %976 = vmatpush1.msra.mxu0 0.0
    %977 = vmatprep.subr.mxu0 0.0
    %978 = vmatpush1.msra.mxu0 0.0
    %979 = vmatprep.subr.mxu0 0.0
    %980 = vmatpush1.msra.mxu0 0.0
    %981 = vmatprep.mubr.f32.mxu0 0.0
    %982 = vmatmul.mubr.f32.gmra.mrb[0].mxu0 %v915
    %v983 = vpop.f32.mrb[0].mxu0
    %v984 = vadd.f32 0.0, %v983
    %v985 = vpop.f32.mrb[0].mxu0
    %986 = vdwg.mxu0
    %v987 = vadd.f32 %v903, %v984
    %v988 = vlaneseq
    %v989 = vshrl.u32 %v988, 7
    %v990 = vsub.s32 1, %v989
    %v991 = vrot.slane %v34, %v990
    %v992 = vadd.f32 %v987, %v991
    %993 = vst [vmem:[#allocation5] sm:$0xff] %v992
    // Predicated region
    $region14: #{tpu_custom_call.1} parent=1 // pred_check
      _
    $region15: #{tpu_custom_call.1} parent=1 // pred_check_branch
      %995 = sbr.rel (0) target = $region17
    $region16: #{tpu_custom_call.1} parent=1 // pred_region
      %s997 = ssub.s32 128, 128
      %998 = vsyncadd [#allocation4], %s997
      %s1000 = sshll.u32 [#allocation5], 4
      %s1001 = int_to_ptr.vmem [resolvable:$true] %s1000
      %1003 = dma.vmem_to_hbm [thread:$0]  %s1001, 128, %s2, [#allocation4]
    $region17: #{tpu_custom_call.1} parent=1 // pred_fallthru
      _
    // Predicated region
    $region18: #{tpu_custom_call.1} parent=1 // pred_check
      _
    $region19: #{tpu_custom_call.1} parent=1 // pred_check_branch
      %1005 = sbr.rel (0) target = $region21
    $region20: #{tpu_custom_call.1} parent=1 // pred_region
      %1006 = dma.done [#allocation4], 128
    $region21: #{tpu_custom_call.1} parent=1 // pred_fallthru
      _
    %1007 = vsyncpa [#allocation3], 1
    %1008 = vsyncpa [#allocation4], 1

</llo_original>
